<compile_context>
chip_gen: v7x
topology: tpu7x:2x2x1
jax: 0.10.0
libtpu: 0.0.40
codegen_flags: <defaults>
</compile_context>

<pallas_src>
import functools

import jax
import jax.numpy as jnp
from jax.experimental import pallas as pl
from jax.experimental.pallas import tpu as pltpu

# Logical dims of the PyTorch module.
K_IN = 784
HID = 200
N_OUT = 10

# Lane-padded dims (x's K dim is NOT padded).
H_PAD = 256    # 200 -> 2*128 hidden
C_PAD = 128    # 10  -> 128 lane-dense output block

_NEG_BIG = -1e30  # finite "-inf" baked into padded class lanes of b3


def _round_up(n, m):
    return ((n + m - 1) // m) * m


def _mlp_kernel(x_ref, w1_ref, b1_ref, w2_ref, b2_ref, w3_ref, b3_ref, o_ref):
    mdt = w1_ref.dtype  # matmul-input dtype (bf16 or f32); accumulation is f32.

    x = x_ref[...]
    if x.dtype != mdt:        # no-op on the bf16 fast path (x arrives as bf16)
        x = x.astype(mdt)

    # fc1 + relu (bias / ReLU in f32)
    h1 = jnp.dot(x, w1_ref[...], preferred_element_type=jnp.float32)
    h1 = jnp.maximum(h1 + b1_ref[...], 0.0)

    # fc2 + relu
    h2 = jnp.dot(h1.astype(mdt), w2_ref[...], preferred_element_type=jnp.float32)
    h2 = jnp.maximum(h2 + b2_ref[...], 0.0)

    # fc3. Padded w3 columns are zero, so the padded-lane logits equal b3's
    # padded lanes (= -1e30): the class mask is free (no iota / where here).
    logits = jnp.dot(h2.astype(mdt), w3_ref[...], preferred_element_type=jnp.float32)
    logits = logits + b3_ref[...]

    # log_softmax over the class axis (dim=1 of the PyTorch module).
    m = jnp.max(logits, axis=-1, keepdims=True)
    shifted = logits - m
    lse = jnp.log(jnp.sum(jnp.exp(shifted), axis=-1, keepdims=True))
    o_ref[...] = (shifted - lse).astype(o_ref.dtype)


def _pad_params(params, matmul_dtype):
    """Lane-pad weights/biases. w1 is padded only on its output dim so the x
    stream keeps its native 784 lanes. b3's padded class lanes carry -1e30
    (the log_softmax mask). Weights carry matmul_dtype; biases stay f32."""
    w1 = jnp.pad(params["w1"], ((0, 0), (0, H_PAD - HID))).astype(matmul_dtype)
    w2 = jnp.pad(params["w2"], ((0, H_PAD - HID), (0, H_PAD - HID))).astype(matmul_dtype)
    w3 = jnp.pad(params["w3"], ((0, H_PAD - HID), (0, C_PAD - N_OUT))).astype(matmul_dtype)
    b1 = jnp.pad(params["b1"], ((0, 0), (0, H_PAD - HID))).astype(jnp.float32)
    b2 = jnp.pad(params["b2"], ((0, 0), (0, H_PAD - HID))).astype(jnp.float32)
    b3 = jnp.pad(params["b3"], ((0, 0), (0, C_PAD - N_OUT)),
                 constant_values=_NEG_BIG).astype(jnp.float32)
    return w1, b1, w2, b2, w3, b3


@functools.partial(jax.jit,
                   static_argnames=("block_b", "matmul_dtype", "core_parallel"))
def net200_forward(x, params, *, block_b=1024, matmul_dtype=jnp.bfloat16,
                   core_parallel=False):
    """x: (B, 784) float32. params: dict w1,b1,w2,b2,w3,b3, weights stored (in,out).

    Returns (B, 10) log-probabilities in `matmul_dtype` (f32 path is exact)."""
    B = x.shape[0]
    assert x.shape[1] == K_IN

    # x is DMA'd from HBM already in the matmul dtype (bf16 halves the dominant
    # HBM stream and the x-tile VMEM footprint).
    x_in = x if x.dtype == matmul_dtype else x.astype(matmul_dtype)

    # Sublane packing: bf16 tiles need 16-row alignment, f32 tiles need 8.
    sub = 16 if jnp.dtype(matmul_dtype).itemsize == 2 else 8
    block_b = _round_up(max(block_b, sub), sub)

    pB = _round_up(B, sub)
    if pB <= block_b:
        # Single batch tile: pad at most (sub - 1) rows so the tile is aligned.
        tb = pB
        if pB != B:
            x_in = jnp.pad(x_in, ((0, pB - B), (0, 0)))
        rows = pB
    else:
        # Multi-tile: no batch padding; cdiv grid with a (possibly partial)
        # last block. Rows are independent and OOB rows are never written.
        tb = block_b
        rows = B

    grid = (pl.cdiv(rows, tb),)
    w1, b1, w2, b2, w3, b3 = _pad_params(params, matmul_dtype)
    out_dtype = matmul_dtype  # bf16 output halves writeback; f32 path stays exact

    resident = lambda i: (0, 0)  # constant block index -> params stay in VMEM

    dsz = jnp.dtype(matmul_dtype).itemsize
    odsz = jnp.dtype(out_dtype).itemsize
    w_bytes = (dsz * (K_IN * H_PAD + H_PAD * H_PAD + H_PAD * C_PAD)
               + 4 * (2 * H_PAD + C_PAD))
    cost = pl.CostEstimate(
        flops=2 * rows * (K_IN * H_PAD + H_PAD * H_PAD + H_PAD * C_PAD),
        transcendentals=rows * (C_PAD + 1),
        bytes_accessed=dsz * rows * K_IN + odsz * rows * C_PAD + w_bytes,
    )

    # Explicit VMEM budget: double-buffered x/out tiles + resident params
    # (conservatively x2) + live f32 intermediates, plus headroom. Kept under
    # v7x's 64 MiB physical VMEM.
    vmem_need = (2 * tb * K_IN * dsz + 2 * tb * C_PAD * odsz + 2 * w_bytes
                 + tb * (2 * H_PAD + C_PAD) * 4)
    vmem_limit = int(min(max(vmem_need + (8 << 20), 32 << 20), 60 << 20))

    # On v7x pass core_parallel=True so both TensorCores drain the batch grid
    # (plain "parallel" barely changes codegen); default stays portable.
    dim_sem = (pltpu.CORE_PARALLEL,) if core_parallel else ("parallel",)

    out_p = pl.pallas_call(
        _mlp_kernel,
        out_shape=jax.ShapeDtypeStruct((rows, C_PAD), out_dtype),
        grid_spec=pltpu.PrefetchScalarGridSpec(
            num_scalar_prefetch=0,
            grid=grid,
            in_specs=[
                pl.BlockSpec((tb, K_IN), lambda i: (i, 0)),   # x tile, native 784 lanes
                pl.BlockSpec((K_IN, H_PAD), resident),        # w1 (784, 256)
                pl.BlockSpec((1, H_PAD), resident),           # b1
                pl.BlockSpec((H_PAD, H_PAD), resident),       # w2
                pl.BlockSpec((1, H_PAD), resident),           # b2
                pl.BlockSpec((H_PAD, C_PAD), resident),       # w3
                pl.BlockSpec((1, C_PAD), resident),           # b3 (-1e30 in pad lanes)
            ],
            out_specs=pl.BlockSpec((tb, C_PAD), lambda i: (i, 0)),  # lane-dense out
        ),
        compiler_params=pltpu.CompilerParams(
            dimension_semantics=dim_sem,
            vmem_limit_bytes=vmem_limit,
        ),
        cost_estimate=cost,
    )(x_in, w1, b1, w2, b2, w3, b3)

    # Drop padded rows (if any) and the padded class lanes.
    return out_p[:B, :N_OUT]


def init_params(key):
    """Deterministic init matching nn.Linear shapes; weights stored (in, out)
    so the kernel computes x @ W."""
    ks = jax.random.split(key, 6)

    def linear(kw, kb, fan_in, fan_out):
        bound = 1.0 / (fan_in ** 0.5)
        w = jax.random.uniform(kw, (fan_in, fan_out), jnp.float32, -bound, bound)
        b = jax.random.uniform(kb, (1, fan_out), jnp.float32, -bound, bound)
        return w, b

    w1, b1 = linear(ks[0], ks[1], K_IN, HID)
    w2, b2 = linear(ks[2], ks[3], HID, HID)
    w3, b3 = linear(ks[4], ks[5], HID, N_OUT)
    return {"w1": w1, "b1": b1, "w2": w2, "b2": b2, "w3": w3, "b3": b3}


def _reference(x, p):
    h1 = jax.nn.relu(x @ p["w1"] + p["b1"])
    h2 = jax.nn.relu(h1 @ p["w2"] + p["b2"])
    logits = h2 @ p["w3"] + p["b3"]
    return jax.nn.log_softmax(logits, axis=1)


if __name__ == "__main__":
    key = jax.random.PRNGKey(0)
    k_x, k_p = jax.random.split(key)

    B = 16
    x = jax.random.normal(k_x, (B, K_IN), jnp.float32)
    params = init_params(k_p)

    ref = _reference(x, params)

    # Default fast path: bf16 matmuls, bf16 x / output HBM streams.
    out_bf16 = jax.block_until_ready(net200_forward(x, params))
    assert out_bf16.shape == (B, N_OUT)
    assert jnp.allclose(out_bf16.astype(jnp.float32), ref, atol=5e-2, rtol=5e-2)

    # f32 reference path: zero-padding keeps the math exact -> tight tolerance.
    out_f32 = jax.block_until_ready(
        net200_forward(x, params, matmul_dtype=jnp.float32))
    assert out_f32.shape == (B, N_OUT)
    assert jnp.allclose(out_f32, ref, atol=1e-5, rtol=1e-5)

    print("KERNEL_OK")
</pallas_src>

<mosaic_0001>
module attributes {stable_mosaic.version = 11 : i64} {
  func.func @_mlp_kernel(%arg0: i32, %arg1: memref<16x784xbf16, #tpu.memory_space<vmem>>, %arg2: memref<784x256xbf16, #tpu.memory_space<vmem>>, %arg3: memref<1x256xf32, #tpu.memory_space<vmem>>, %arg4: memref<256x256xbf16, #tpu.memory_space<vmem>>, %arg5: memref<1x256xf32, #tpu.memory_space<vmem>>, %arg6: memref<256x128xbf16, #tpu.memory_space<vmem>>, %arg7: memref<1x128xf32, #tpu.memory_space<vmem>>, %arg8: memref<16x128xbf16, #tpu.memory_space<vmem>>) attributes {dimension_semantics = [#tpu.dimension_semantics<parallel>], iteration_bounds = array<i64: 1>, scalar_prefetch = 0 : i64, scratch_operands = 0 : i64, tpu.core_type = #tpu.core_type<tc>, window_params = [{transform_indices = @transform_0, window_bounds = array<i64: 16, 784>}, {pipeline_mode = #tpu.pipeline_mode<synchronous>, transform_indices = @transform_1, window_bounds = array<i64: 784, 256>}, {pipeline_mode = #tpu.pipeline_mode<synchronous>, transform_indices = @transform_2, window_bounds = array<i64: 1, 256>}, {pipeline_mode = #tpu.pipeline_mode<synchronous>, transform_indices = @transform_3, window_bounds = array<i64: 256, 256>}, {pipeline_mode = #tpu.pipeline_mode<synchronous>, transform_indices = @transform_4, window_bounds = array<i64: 1, 256>}, {pipeline_mode = #tpu.pipeline_mode<synchronous>, transform_indices = @transform_5, window_bounds = array<i64: 256, 128>}, {pipeline_mode = #tpu.pipeline_mode<synchronous>, transform_indices = @transform_6, window_bounds = array<i64: 1, 128>}, {transform_indices = @transform_7, window_bounds = array<i64: 16, 128>}]} {
    %c0 = arith.constant 0 : index
    %c0_0 = arith.constant 0 : index
    %0 = vector.load %arg1[%c0, %c0_0] : memref<16x784xbf16, #tpu.memory_space<vmem>>, vector<16x784xbf16>
    %c0_1 = arith.constant 0 : index
    %c0_2 = arith.constant 0 : index
    %1 = vector.load %arg2[%c0_1, %c0_2] : memref<784x256xbf16, #tpu.memory_space<vmem>>, vector<784x256xbf16>
    %cst = arith.constant dense<0.000000e+00> : vector<16x256xf32>
    %2 = tpu.matmul %0, %1, %cst {dimension_numbers = #tpu.dot_dimension_numbers<[1], [0], [0], [1], [0, 0, 1, 1], [], []>} : vector<16x784xbf16>, vector<784x256xbf16>, vector<16x256xf32> -> vector<16x256xf32>
    %c0_3 = arith.constant 0 : index
    %c0_4 = arith.constant 0 : index
    %3 = vector.load %arg3[%c0_3, %c0_4] : memref<1x256xf32, #tpu.memory_space<vmem>>, vector<1x256xf32>
    %4 = vector.broadcast %3 : vector<1x256xf32> to vector<16x256xf32>
    %5 = arith.addf %2, %4 : vector<16x256xf32>
    %cst_5 = arith.constant 0.000000e+00 : f32
    %6 = vector.broadcast %cst_5 : f32 to vector<16x256xf32>
    %7 = arith.maximumf %5, %6 : vector<16x256xf32>
    %8 = arith.truncf %7 : vector<16x256xf32> to vector<16x256xbf16>
    %c0_6 = arith.constant 0 : index
    %c0_7 = arith.constant 0 : index
    %9 = vector.load %arg4[%c0_6, %c0_7] : memref<256x256xbf16, #tpu.memory_space<vmem>>, vector<256x256xbf16>
    %cst_8 = arith.constant dense<0.000000e+00> : vector<16x256xf32>
    %10 = tpu.matmul %8, %9, %cst_8 {dimension_numbers = #tpu.dot_dimension_numbers<[1], [0], [0], [1], [0, 0, 1, 1], [], []>} : vector<16x256xbf16>, vector<256x256xbf16>, vector<16x256xf32> -> vector<16x256xf32>
    %c0_9 = arith.constant 0 : index
    %c0_10 = arith.constant 0 : index
    %11 = vector.load %arg5[%c0_9, %c0_10] : memref<1x256xf32, #tpu.memory_space<vmem>>, vector<1x256xf32>
    %12 = vector.broadcast %11 : vector<1x256xf32> to vector<16x256xf32>
    %13 = arith.addf %10, %12 : vector<16x256xf32>
    %cst_11 = arith.constant 0.000000e+00 : f32
    %14 = vector.broadcast %cst_11 : f32 to vector<16x256xf32>
    %15 = arith.maximumf %13, %14 : vector<16x256xf32>
    %16 = arith.truncf %15 : vector<16x256xf32> to vector<16x256xbf16>
    %c0_12 = arith.constant 0 : index
    %c0_13 = arith.constant 0 : index
    %17 = vector.load %arg6[%c0_12, %c0_13] : memref<256x128xbf16, #tpu.memory_space<vmem>>, vector<256x128xbf16>
    %cst_14 = arith.constant dense<0.000000e+00> : vector<16x128xf32>
    %18 = tpu.matmul %16, %17, %cst_14 {dimension_numbers = #tpu.dot_dimension_numbers<[1], [0], [0], [1], [0, 0, 1, 1], [], []>} : vector<16x256xbf16>, vector<256x128xbf16>, vector<16x128xf32> -> vector<16x128xf32>
    %c0_15 = arith.constant 0 : index
    %c0_16 = arith.constant 0 : index
    %19 = vector.load %arg7[%c0_15, %c0_16] : memref<1x128xf32, #tpu.memory_space<vmem>>, vector<1x128xf32>
    %20 = vector.broadcast %19 : vector<1x128xf32> to vector<16x128xf32>
    %21 = arith.addf %18, %20 : vector<16x128xf32>
    %cst_17 = arith.constant dense<0xFF800000> : vector<16xf32>
    %22 = vector.multi_reduction <maximumf>, %21, %cst_17 [1] : vector<16x128xf32> to vector<16xf32>
    %23 = vector.shape_cast %22 : vector<16xf32> to vector<16x1xf32>
    %24 = vector.broadcast %23 : vector<16x1xf32> to vector<16x128xf32>
    %25 = arith.subf %21, %24 : vector<16x128xf32>
    %26 = math.exp %25 : vector<16x128xf32>
    %cst_18 = arith.constant dense<0.000000e+00> : vector<16xf32>
    %27 = vector.multi_reduction <add>, %26, %cst_18 [1] : vector<16x128xf32> to vector<16xf32>
    %28 = vector.shape_cast %27 : vector<16xf32> to vector<16x1xf32>
    %29 = math.log %28 : vector<16x1xf32>
    %30 = vector.broadcast %29 : vector<16x1xf32> to vector<16x128xf32>
    %31 = arith.subf %25, %30 : vector<16x128xf32>
    %32 = arith.truncf %31 : vector<16x128xf32> to vector<16x128xbf16>
    %c0_19 = arith.constant 0 : index
    %c0_20 = arith.constant 0 : index
    %33 = vector.load %arg8[%c0_19, %c0_20] : memref<16x128xbf16, #tpu.memory_space<vmem>>, vector<16x128xbf16>
    tpu.vector_store %arg8[%c0_19, %c0_20], %32 {strides = array<i32>} : memref<16x128xbf16, #tpu.memory_space<vmem>>, vector<16x128xbf16>,
    return
  }
  func.func @transform_0(%arg0: i32) -> (i32, i32) {
    %c0_i32 = arith.constant 0 : i32
    %c0_i32_0 = arith.constant 0 : i32
    return %arg0, %c0_i32 : i32, i32
  }
  func.func @transform_1(%arg0: i32) -> (i32, i32) {
    %c0_i32 = arith.constant 0 : i32
    %c0_i32_0 = arith.constant 0 : i32
    %c0_i32_1 = arith.constant 0 : i32
    return %c0_i32, %c0_i32_0 : i32, i32
  }
  func.func @transform_2(%arg0: i32) -> (i32, i32) {
    %c0_i32 = arith.constant 0 : i32
    %c0_i32_0 = arith.constant 0 : i32
    %c0_i32_1 = arith.constant 0 : i32
    return %c0_i32, %c0_i32_0 : i32, i32
  }
  func.func @transform_3(%arg0: i32) -> (i32, i32) {
    %c0_i32 = arith.constant 0 : i32
    %c0_i32_0 = arith.constant 0 : i32
    %c0_i32_1 = arith.constant 0 : i32
    return %c0_i32, %c0_i32_0 : i32, i32
  }
  func.func @transform_4(%arg0: i32) -> (i32, i32) {
    %c0_i32 = arith.constant 0 : i32
    %c0_i32_0 = arith.constant 0 : i32
    %c0_i32_1 = arith.constant 0 : i32
    return %c0_i32, %c0_i32_0 : i32, i32
  }
  func.func @transform_5(%arg0: i32) -> (i32, i32) {
    %c0_i32 = arith.constant 0 : i32
    %c0_i32_0 = arith.constant 0 : i32
    %c0_i32_1 = arith.constant 0 : i32
    return %c0_i32, %c0_i32_0 : i32, i32
  }
  func.func @transform_6(%arg0: i32) -> (i32, i32) {
    %c0_i32 = arith.constant 0 : i32
    %c0_i32_0 = arith.constant 0 : i32
    %c0_i32_1 = arith.constant 0 : i32
    return %c0_i32, %c0_i32_0 : i32, i32
  }
  func.func @transform_7(%arg0: i32) -> (i32, i32) {
    %c0_i32 = arith.constant 0 : i32
    %c0_i32_0 = arith.constant 0 : i32
    return %arg0, %c0_i32 : i32, i32
  }
}

</mosaic_0001>

<llo_original>
// kernel: net200_forward.1
$region0: #{net200_forward.1}
  #allocation0 [shape = 'u32[]', space=smem, size = 0x4, offset = 0x4, fixed_abs, tag = 'smem constant byte address 0x4 - core index']
  #allocation1 [shape = 'u32[144,128]{1,0:T(1,128)}', space=vmem, size = 0x12000, scoped, tag = 'internal scratch']
  %s0 = inlined_call_operand.vmem [shape: bf16[16,784], index: 0, kind: input, shape index: {}]
  %s1 = inlined_call_operand.vmem [shape: bf16[784,256], index: 1, kind: input, shape index: {}]
  %s2 = inlined_call_operand.vmem [shape: f32[1,256], index: 2, kind: input, shape index: {}]
  %s3 = inlined_call_operand.vmem [shape: bf16[256,256], index: 3, kind: input, shape index: {}]
  %s4 = inlined_call_operand.vmem [shape: f32[1,256], index: 4, kind: input, shape index: {}]
  %s5 = inlined_call_operand.vmem [shape: bf16[256,128], index: 5, kind: input, shape index: {}]
  %s6 = inlined_call_operand.vmem [shape: f32[1,128], index: 6, kind: input, shape index: {}]
  %s7 = inlined_call_operand.hbm [shape: bf16[16,128], index: 7, kind: output, shape index: {}]
  %s8 = sld [smem:[#allocation0]]
  $region38: #{net200_forward.1} parent=0
    _
  %s10 = ssub.s32 1, %s8
  %s11 = scalar_select 0, %s10, %s8
  $region1: #{net200_forward.1} parent=0
    #allocation2 [shape = 'u8[4096]{0}', space=vmem, size = 0x1000, scoped, tag = 'output window, operand 0, single buffered']
    #allocation3 [shape = 's32[1]{0}', space=sflag, size = 0x4, scoped, tag = 'scoped memory for net200_forward.1']
    %12 = vsyncpa [#allocation3], 0
    // Predicated region
    $region2: #{net200_forward.1} parent=1 // pred_check
      _
    $region3: #{net200_forward.1} parent=1 // pred_check_branch
      %14 = sbr.rel (0) target = $region5
    $region4: #{net200_forward.1} parent=1 // pred_region
      _
    $region5: #{net200_forward.1} parent=1 // pred_fallthru
      _
    // Predicated region
    $region6: #{net200_forward.1} parent=1 // pred_check
      _
    $region7: #{net200_forward.1} parent=1 // pred_check_branch
      %16 = sbr.rel (0) target = $region9
    $region8: #{net200_forward.1} parent=1 // pred_region
      _
    $region9: #{net200_forward.1} parent=1 // pred_fallthru
      _
    // Predicated region
    $region10: #{net200_forward.1} parent=1 // pred_check
      _
    $region11: #{net200_forward.1} parent=1 // pred_check_branch
      %18 = sbr.rel (0) target = $region13
    $region12: #{net200_forward.1} parent=1 // pred_region
      _
    $region13: #{net200_forward.1} parent=1 // pred_fallthru
      _
    // Predicated region
    $region14: #{net200_forward.1} parent=1 // pred_check
      _
    $region15: #{net200_forward.1} parent=1 // pred_check_branch
      %20 = sbr.rel (0) target = $region17
    $region16: #{net200_forward.1} parent=1 // pred_region
      _
    $region17: #{net200_forward.1} parent=1 // pred_fallthru
      _
    // Predicated region
    $region18: #{net200_forward.1} parent=1 // pred_check
      _
    $region19: #{net200_forward.1} parent=1 // pred_check_branch
      %22 = sbr.rel (0) target = $region21
    $region20: #{net200_forward.1} parent=1 // pred_region
      _
    $region21: #{net200_forward.1} parent=1 // pred_fallthru
      _
    // Predicated region
    $region22: #{net200_forward.1} parent=1 // pred_check
      _
    $region23: #{net200_forward.1} parent=1 // pred_check_branch
      %24 = sbr.rel (0) target = $region25
    $region24: #{net200_forward.1} parent=1 // pred_region
      _
    $region25: #{net200_forward.1} parent=1 // pred_fallthru
      _
    // Predicated region
    $region26: #{net200_forward.1} parent=1 // pred_check
      _
    $region27: #{net200_forward.1} parent=1 // pred_check_branch
      %26 = sbr.rel (0) target = $region29
    $region28: #{net200_forward.1} parent=1 // pred_region
      _
    $region29: #{net200_forward.1} parent=1 // pred_fallthru
      _
    %v28 = vld [vmem:[%s0] sm:$0xff]
    %v29 = vld [vmem:[%s0 + $0x8] sm:$0xff]
    %v30 = vld [vmem:[%s0 + $0x10] sm:$0xff]
    %v31 = vld [vmem:[%s0 + $0x18] sm:$0xf]
    %v32 = vld [vmem:[%s0 + $0x1c] sm:$0xff]
    %v33 = vld [vmem:[%s0 + $0x24] sm:$0xff]
    %v34 = vld [vmem:[%s0 + $0x2c] sm:$0xff]
    %v35 = vld [vmem:[%s0 + $0x34] sm:$0xf]
    %v36 = vld [vmem:[%s1] sm:$0xff]
    %v37 = vld [vmem:[%s1 + $0x8] sm:$0xff]
    %v38 = vld [vmem:[%s1 + $0x10] sm:$0xff]
    %v39 = vld [vmem:[%s1 + $0x18] sm:$0xff]
    %v40 = vld [vmem:[%s1 + $0x20] sm:$0xff]
    %v41 = vld [vmem:[%s1 + $0x28] sm:$0xff]
    %v42 = vld [vmem:[%s1 + $0x30] sm:$0xff]
    %v43 = vld [vmem:[%s1 + $0x38] sm:$0xff]
    %v44 = vld [vmem:[%s1 + $0x40] sm:$0xff]
    %v45 = vld [vmem:[%s1 + $0x48] sm:$0xff]
    %v46 = vld [vmem:[%s1 + $0x50] sm:$0xff]
    %v47 = vld [vmem:[%s1 + $0x58] sm:$0xff]
    %v48 = vld [vmem:[%s1 + $0x60] sm:$0xff]
    %v49 = vld [vmem:[%s1 + $0x68] sm:$0xff]
    %v50 = vld [vmem:[%s1 + $0x70] sm:$0xff]
    %v51 = vld [vmem:[%s1 + $0x78] sm:$0xff]
    %v52 = vld [vmem:[%s1 + $0x80] sm:$0xff]
    %v53 = vld [vmem:[%s1 + $0x88] sm:$0xff]
    %v54 = vld [vmem:[%s1 + $0x90] sm:$0xff]
    %v55 = vld [vmem:[%s1 + $0x98] sm:$0xff]
    %v56 = vld [vmem:[%s1 + $0xa0] sm:$0xff]
    %v57 = vld [vmem:[%s1 + $0xa8] sm:$0xff]
    %v58 = vld [vmem:[%s1 + $0xb0] sm:$0xff]
    %v59 = vld [vmem:[%s1 + $0xb8] sm:$0xff]
    %v60 = vld [vmem:[%s1 + $0xc0] sm:$0xff]
    %v61 = vld [vmem:[%s1 + $0xc8] sm:$0xff]
    %v62 = vld [vmem:[%s1 + $0xd0] sm:$0xff]
    %v63 = vld [vmem:[%s1 + $0xd8] sm:$0xff]
    %v64 = vld [vmem:[%s1 + $0xe0] sm:$0xff]
    %v65 = vld [vmem:[%s1 + $0xe8] sm:$0xff]
    %v66 = vld [vmem:[%s1 + $0xf0] sm:$0xff]
    %v67 = vld [vmem:[%s1 + $0xf8] sm:$0xff]
    %v68 = vld [vmem:[%s1 + $0x100] sm:$0xff]
    %v69 = vld [vmem:[%s1 + $0x108] sm:$0xff]
    %v70 = vld [vmem:[%s1 + $0x110] sm:$0xff]
    %v71 = vld [vmem:[%s1 + $0x118] sm:$0xff]
    %v72 = vld [vmem:[%s1 + $0x120] sm:$0xff]
    %v73 = vld [vmem:[%s1 + $0x128] sm:$0xff]
    %v74 = vld [vmem:[%s1 + $0x130] sm:$0xff]
    %v75 = vld [vmem:[%s1 + $0x138] sm:$0xff]
    %v76 = vld [vmem:[%s1 + $0x140] sm:$0xff]
    %v77 = vld [vmem:[%s1 + $0x148] sm:$0xff]
    %v78 = vld [vmem:[%s1 + $0x150] sm:$0xff]
    %v79 = vld [vmem:[%s1 + $0x158] sm:$0xff]
    %v80 = vld [vmem:[%s1 + $0x160] sm:$0xff]
    %v81 = vld [vmem:[%s1 + $0x168] sm:$0xff]
    %v82 = vld [vmem:[%s1 + $0x170] sm:$0xff]
    %v83 = vld [vmem:[%s1 + $0x178] sm:$0xff]
    %v84 = vld [vmem:[%s1 + $0x180] sm:$0xff]
    %v85 = vld [vmem:[%s1 + $0x188] sm:$0xff]
    %v86 = vld [vmem:[%s1 + $0x190] sm:$0xff]
    %v87 = vld [vmem:[%s1 + $0x198] sm:$0xff]
    %v88 = vld [vmem:[%s1 + $0x1a0] sm:$0xff]
    %v89 = vld [vmem:[%s1 + $0x1a8] sm:$0xff]
    %v90 = vld [vmem:[%s1 + $0x1b0] sm:$0xff]
    %v91 = vld [vmem:[%s1 + $0x1b8] sm:$0xff]
    %v92 = vld [vmem:[%s1 + $0x1c0] sm:$0xff]
    %v93 = vld [vmem:[%s1 + $0x1c8] sm:$0xff]
    %v94 = vld [vmem:[%s1 + $0x1d0] sm:$0xff]
    %v95 = vld [vmem:[%s1 + $0x1d8] sm:$0xff]
    %v96 = vld [vmem:[%s1 + $0x1e0] sm:$0xff]
    %v97 = vld [vmem:[%s1 + $0x1e8] sm:$0xff]
    %v98 = vld [vmem:[%s1 + $0x1f0] sm:$0xff]
    %v99 = vld [vmem:[%s1 + $0x1f8] sm:$0xff]
    %v100 = vld [vmem:[%s1 + $0x200] sm:$0xff]
    %v101 = vld [vmem:[%s1 + $0x208] sm:$0xff]
    %v102 = vld [vmem:[%s1 + $0x210] sm:$0xff]
    %v103 = vld [vmem:[%s1 + $0x218] sm:$0xff]
    %v104 = vld [vmem:[%s1 + $0x220] sm:$0xff]
    %v105 = vld [vmem:[%s1 + $0x228] sm:$0xff]
    %v106 = vld [vmem:[%s1 + $0x230] sm:$0xff]
    %v107 = vld [vmem:[%s1 + $0x238] sm:$0xff]
    %v108 = vld [vmem:[%s1 + $0x240] sm:$0xff]
    %v109 = vld [vmem:[%s1 + $0x248] sm:$0xff]
    %v110 = vld [vmem:[%s1 + $0x250] sm:$0xff]
    %v111 = vld [vmem:[%s1 + $0x258] sm:$0xff]
    %v112 = vld [vmem:[%s1 + $0x260] sm:$0xff]
    %v113 = vld [vmem:[%s1 + $0x268] sm:$0xff]
    %v114 = vld [vmem:[%s1 + $0x270] sm:$0xff]
    %v115 = vld [vmem:[%s1 + $0x278] sm:$0xff]
    %v116 = vld [vmem:[%s1 + $0x280] sm:$0xff]
    %v117 = vld [vmem:[%s1 + $0x288] sm:$0xff]
    %v118 = vld [vmem:[%s1 + $0x290] sm:$0xff]
    %v119 = vld [vmem:[%s1 + $0x298] sm:$0xff]
    %v120 = vld [vmem:[%s1 + $0x2a0] sm:$0xff]
    %v121 = vld [vmem:[%s1 + $0x2a8] sm:$0xff]
    %v122 = vld [vmem:[%s1 + $0x2b0] sm:$0xff]
    %v123 = vld [vmem:[%s1 + $0x2b8] sm:$0xff]
    %v124 = vld [vmem:[%s1 + $0x2c0] sm:$0xff]
    %v125 = vld [vmem:[%s1 + $0x2c8] sm:$0xff]
    %v126 = vld [vmem:[%s1 + $0x2d0] sm:$0xff]
    %v127 = vld [vmem:[%s1 + $0x2d8] sm:$0xff]
    %v128 = vld [vmem:[%s1 + $0x2e0] sm:$0xff]
    %v129 = vld [vmem:[%s1 + $0x2e8] sm:$0xff]
    %v130 = vld [vmem:[%s1 + $0x2f0] sm:$0xff]
    %v131 = vld [vmem:[%s1 + $0x2f8] sm:$0xff]
    %v132 = vld [vmem:[%s1 + $0x300] sm:$0xff]
    %v133 = vld [vmem:[%s1 + $0x308] sm:$0xff]
    %v134 = vld [vmem:[%s2] sm:$0x3]
    %v136 = vlaneseq
    %v137 = vshrl.u32 %v136, 7
    %v138 = vsub.s32 0, %v137
    %v139 = vrot.slane %v134, %v138
    %v140 = vlaneseq
    %v141 = vshrl.u32 %v140, 7
    %v142 = vsub.s32 1, %v141
    %v143 = vrot.slane %v134, %v142
    %v154 = vunpack.c.l.b16 %v28
    %v155 = vunpack.c.h.b16 %v28
    %v156 = vunpack.c.l.b16 %v29
    %v157 = vunpack.c.h.b16 %v29
    %v158 = vunpack.c.l.b16 %v30
    %v159 = vunpack.c.h.b16 %v30
    %v160 = vunpack.c.l.b16 %v31
    %v161 = vunpack.c.l.b16 %v32
    %v162 = vunpack.c.h.b16 %v32
    %v163 = vunpack.c.l.b16 %v33
    %v164 = vunpack.c.h.b16 %v33
    %v165 = vunpack.c.l.b16 %v34
    %v166 = vunpack.c.h.b16 %v34
    %v167 = vunpack.c.l.b16 %v35
    %v168 = vpack.c.b16 %v161, %v154
    %v169 = vpack.c.b16 %v162, %v155
    %v170 = vpack.c.b16 %v163, %v156
    %v171 = vpack.c.b16 %v164, %v157
    %v172 = vpack.c.b16 %v165, %v158
    %v173 = vpack.c.b16 %v166, %v159
    %v174 = vpack.c.b16 %v167, %v160
    %v279 = vunpack.c.l.b16 %v36
    %v280 = vunpack.c.h.b16 %v36
    %v281 = vunpack.c.l.b16 %v37
    %v282 = vunpack.c.h.b16 %v37
    %v283 = vunpack.c.l.b16 %v38
    %v284 = vunpack.c.h.b16 %v38
    %v285 = vunpack.c.l.b16 %v39
    %v286 = vunpack.c.h.b16 %v39
    %v287 = vunpack.c.l.b16 %v40
    %v288 = vunpack.c.h.b16 %v40
    %v289 = vunpack.c.l.b16 %v41
    %v290 = vunpack.c.h.b16 %v41
    %v291 = vunpack.c.l.b16 %v42
    %v292 = vunpack.c.h.b16 %v42
    %v293 = vunpack.c.l.b16 %v43
    %v294 = vunpack.c.h.b16 %v43
    %v295 = vunpack.c.l.b16 %v44
    %v296 = vunpack.c.h.b16 %v44
    %v297 = vunpack.c.l.b16 %v45
    %v298 = vunpack.c.h.b16 %v45
    %v299 = vunpack.c.l.b16 %v46
    %v300 = vunpack.c.h.b16 %v46
    %v301 = vunpack.c.l.b16 %v47
    %v302 = vunpack.c.h.b16 %v47
    %v303 = vunpack.c.l.b16 %v48
    %v304 = vunpack.c.h.b16 %v48
    %v305 = vunpack.c.l.b16 %v49
    %v306 = vunpack.c.h.b16 %v49
    %v307 = vunpack.c.l.b16 %v50
    %v308 = vunpack.c.h.b16 %v50
    %v309 = vunpack.c.l.b16 %v51
    %v310 = vunpack.c.h.b16 %v51
    %v311 = vunpack.c.l.b16 %v52
    %v312 = vunpack.c.h.b16 %v52
    %v313 = vunpack.c.l.b16 %v53
    %v314 = vunpack.c.h.b16 %v53
    %v315 = vunpack.c.l.b16 %v54
    %v316 = vunpack.c.h.b16 %v54
    %v317 = vunpack.c.l.b16 %v55
    %v318 = vunpack.c.h.b16 %v55
    %v319 = vunpack.c.l.b16 %v56
    %v320 = vunpack.c.h.b16 %v56
    %v321 = vunpack.c.l.b16 %v57
    %v322 = vunpack.c.h.b16 %v57
    %v323 = vunpack.c.l.b16 %v58
    %v324 = vunpack.c.h.b16 %v58
    %v325 = vunpack.c.l.b16 %v59
    %v326 = vunpack.c.h.b16 %v59
    %v327 = vunpack.c.l.b16 %v60
    %v328 = vunpack.c.h.b16 %v60
    %v329 = vunpack.c.l.b16 %v61
    %v330 = vunpack.c.h.b16 %v61
    %v331 = vunpack.c.l.b16 %v62
    %v332 = vunpack.c.h.b16 %v62
    %v333 = vunpack.c.l.b16 %v63
    %v334 = vunpack.c.h.b16 %v63
    %v335 = vunpack.c.l.b16 %v64
    %v336 = vunpack.c.h.b16 %v64
    %v337 = vunpack.c.l.b16 %v65
    %v338 = vunpack.c.h.b16 %v65
    %v339 = vunpack.c.l.b16 %v66
    %v340 = vunpack.c.h.b16 %v66
    %v341 = vunpack.c.l.b16 %v67
    %v342 = vunpack.c.h.b16 %v67
    %v343 = vunpack.c.l.b16 %v68
    %v344 = vunpack.c.h.b16 %v68
    %v345 = vunpack.c.l.b16 %v69
    %v346 = vunpack.c.h.b16 %v69
    %v347 = vunpack.c.l.b16 %v70
    %v348 = vunpack.c.h.b16 %v70
    %v349 = vunpack.c.l.b16 %v71
    %v350 = vunpack.c.h.b16 %v71
    %v351 = vunpack.c.l.b16 %v72
    %v352 = vunpack.c.h.b16 %v72
    %v353 = vunpack.c.l.b16 %v73
    %v354 = vunpack.c.h.b16 %v73
    %v355 = vunpack.c.l.b16 %v74
    %v356 = vunpack.c.h.b16 %v74
    %v357 = vunpack.c.l.b16 %v75
    %v358 = vunpack.c.h.b16 %v75
    %v359 = vunpack.c.l.b16 %v76
    %v360 = vunpack.c.h.b16 %v76
    %v361 = vunpack.c.l.b16 %v77
    %v362 = vunpack.c.h.b16 %v77
    %v363 = vunpack.c.l.b16 %v78
    %v364 = vunpack.c.h.b16 %v78
    %v365 = vunpack.c.l.b16 %v79
    %v366 = vunpack.c.h.b16 %v79
    %v367 = vunpack.c.l.b16 %v80
    %v368 = vunpack.c.h.b16 %v80
    %v369 = vunpack.c.l.b16 %v81
    %v370 = vunpack.c.h.b16 %v81
    %v371 = vunpack.c.l.b16 %v82
    %v372 = vunpack.c.h.b16 %v82
    %v373 = vunpack.c.l.b16 %v83
    %v374 = vunpack.c.h.b16 %v83
    %v375 = vunpack.c.l.b16 %v84
    %v376 = vunpack.c.h.b16 %v84
    %v377 = vunpack.c.l.b16 %v85
    %v378 = vunpack.c.h.b16 %v85
    %v379 = vunpack.c.l.b16 %v86
    %v380 = vunpack.c.h.b16 %v86
    %v381 = vunpack.c.l.b16 %v87
    %v382 = vunpack.c.h.b16 %v87
    %v383 = vunpack.c.l.b16 %v88
    %v384 = vunpack.c.h.b16 %v88
    %v385 = vunpack.c.l.b16 %v89
    %v386 = vunpack.c.h.b16 %v89
    %v387 = vunpack.c.l.b16 %v90
    %v388 = vunpack.c.h.b16 %v90
    %v389 = vunpack.c.l.b16 %v91
    %v390 = vunpack.c.h.b16 %v91
    %v391 = vunpack.c.l.b16 %v92
    %v392 = vunpack.c.h.b16 %v92
    %v393 = vunpack.c.l.b16 %v93
    %v394 = vunpack.c.h.b16 %v93
    %v395 = vunpack.c.l.b16 %v94
    %v396 = vunpack.c.h.b16 %v94
    %v397 = vunpack.c.l.b16 %v95
    %v398 = vunpack.c.h.b16 %v95
    %v399 = vunpack.c.l.b16 %v96
    %v400 = vunpack.c.h.b16 %v96
    %v401 = vunpack.c.l.b16 %v97
    %v402 = vunpack.c.h.b16 %v97
    %v403 = vunpack.c.l.b16 %v98
    %v404 = vunpack.c.h.b16 %v98
    %v405 = vunpack.c.l.b16 %v99
    %v406 = vunpack.c.h.b16 %v99
    %v407 = vunpack.c.l.b16 %v100
    %v408 = vunpack.c.h.b16 %v100
    %v409 = vunpack.c.l.b16 %v101
    %v410 = vunpack.c.h.b16 %v101
    %v411 = vunpack.c.l.b16 %v102
    %v412 = vunpack.c.h.b16 %v102
    %v413 = vunpack.c.l.b16 %v103
    %v414 = vunpack.c.h.b16 %v103
    %v415 = vunpack.c.l.b16 %v104
    %v416 = vunpack.c.h.b16 %v104
    %v417 = vunpack.c.l.b16 %v105
    %v418 = vunpack.c.h.b16 %v105
    %v419 = vunpack.c.l.b16 %v106
    %v420 = vunpack.c.h.b16 %v106
    %v421 = vunpack.c.l.b16 %v107
    %v422 = vunpack.c.h.b16 %v107
    %v423 = vunpack.c.l.b16 %v108
    %v424 = vunpack.c.h.b16 %v108
    %v425 = vunpack.c.l.b16 %v109
    %v426 = vunpack.c.h.b16 %v109
    %v427 = vunpack.c.l.b16 %v110
    %v428 = vunpack.c.h.b16 %v110
    %v429 = vunpack.c.l.b16 %v111
    %v430 = vunpack.c.h.b16 %v111
    %v431 = vunpack.c.l.b16 %v112
    %v432 = vunpack.c.h.b16 %v112
    %v433 = vunpack.c.l.b16 %v113
    %v434 = vunpack.c.h.b16 %v113
    %v435 = vunpack.c.l.b16 %v114
    %v436 = vunpack.c.h.b16 %v114
    %v437 = vunpack.c.l.b16 %v115
    %v438 = vunpack.c.h.b16 %v115
    %v439 = vunpack.c.l.b16 %v116
    %v440 = vunpack.c.h.b16 %v116
    %v441 = vunpack.c.l.b16 %v117
    %v442 = vunpack.c.h.b16 %v117
    %v443 = vunpack.c.l.b16 %v118
    %v444 = vunpack.c.h.b16 %v118
    %v445 = vunpack.c.l.b16 %v119
    %v446 = vunpack.c.h.b16 %v119
    %v447 = vunpack.c.l.b16 %v120
    %v448 = vunpack.c.h.b16 %v120
    %v449 = vunpack.c.l.b16 %v121
    %v450 = vunpack.c.h.b16 %v121
    %v451 = vunpack.c.l.b16 %v122
    %v452 = vunpack.c.h.b16 %v122
    %v453 = vunpack.c.l.b16 %v123
    %v454 = vunpack.c.h.b16 %v123
    %v455 = vunpack.c.l.b16 %v124
    %v456 = vunpack.c.h.b16 %v124
    %v457 = vunpack.c.l.b16 %v125
    %v458 = vunpack.c.h.b16 %v125
    %v459 = vunpack.c.l.b16 %v126
    %v460 = vunpack.c.h.b16 %v126
    %v461 = vunpack.c.l.b16 %v127
    %v462 = vunpack.c.h.b16 %v127
    %v463 = vunpack.c.l.b16 %v128
    %v464 = vunpack.c.h.b16 %v128
    %v465 = vunpack.c.l.b16 %v129
    %v466 = vunpack.c.h.b16 %v129
    %v467 = vunpack.c.l.b16 %v130
    %v468 = vunpack.c.h.b16 %v130
    %v469 = vunpack.c.l.b16 %v131
    %v470 = vunpack.c.h.b16 %v131
    %v471 = vunpack.c.l.b16 %v132
    %v472 = vunpack.c.h.b16 %v132
    %v473 = vunpack.c.l.b16 %v133
    %v474 = vunpack.c.h.b16 %v133
    %v475 = vpack.c.b16 %v281, %v279
    %v476 = vpack.c.b16 %v282, %v280
    %v477 = vpack.c.b16 %v285, %v283
    %v478 = vpack.c.b16 %v286, %v284
    %v479 = vpack.c.b16 %v289, %v287
    %v480 = vpack.c.b16 %v290, %v288
    %v481 = vpack.c.b16 %v293, %v291
    %v482 = vpack.c.b16 %v294, %v292
    %v483 = vpack.c.b16 %v297, %v295
    %v484 = vpack.c.b16 %v298, %v296
    %v485 = vpack.c.b16 %v301, %v299
    %v486 = vpack.c.b16 %v302, %v300
    %v487 = vpack.c.b16 %v305, %v303
    %v488 = vpack.c.b16 %v306, %v304
    %v489 = vpack.c.b16 %v309, %v307
    %v490 = vpack.c.b16 %v310, %v308
    %v491 = vpack.c.b16 %v313, %v311
    %v492 = vpack.c.b16 %v314, %v312
    %v493 = vpack.c.b16 %v317, %v315
    %v494 = vpack.c.b16 %v318, %v316
    %v495 = vpack.c.b16 %v321, %v319
    %v496 = vpack.c.b16 %v322, %v320
    %v497 = vpack.c.b16 %v325, %v323
    %v498 = vpack.c.b16 %v326, %v324
    %v499 = vpack.c.b16 %v329, %v327
    %v500 = vpack.c.b16 %v330, %v328
    %v501 = vpack.c.b16 %v333, %v331
    %v502 = vpack.c.b16 %v334, %v332
    %v503 = vpack.c.b16 %v337, %v335
    %v504 = vpack.c.b16 %v338, %v336
    %v505 = vpack.c.b16 %v341, %v339
    %v506 = vpack.c.b16 %v342, %v340
    %v507 = vpack.c.b16 %v345, %v343
    %v508 = vpack.c.b16 %v346, %v344
    %v509 = vpack.c.b16 %v349, %v347
    %v510 = vpack.c.b16 %v350, %v348
    %v511 = vpack.c.b16 %v353, %v351
    %v512 = vpack.c.b16 %v354, %v352
    %v513 = vpack.c.b16 %v357, %v355
    %v514 = vpack.c.b16 %v358, %v356
    %v515 = vpack.c.b16 %v361, %v359
    %v516 = vpack.c.b16 %v362, %v360
    %v517 = vpack.c.b16 %v365, %v363
    %v518 = vpack.c.b16 %v366, %v364
    %v519 = vpack.c.b16 %v369, %v367
    %v520 = vpack.c.b16 %v370, %v368
    %v521 = vpack.c.b16 %v373, %v371
    %v522 = vpack.c.b16 %v374, %v372
    %v523 = vpack.c.b16 %v377, %v375
    %v524 = vpack.c.b16 %v378, %v376
    %v525 = vpack.c.b16 %v381, %v379
    %v526 = vpack.c.b16 %v382, %v380
    %v527 = vpack.c.b16 %v385, %v383
    %v528 = vpack.c.b16 %v386, %v384
    %v529 = vpack.c.b16 %v389, %v387
    %v530 = vpack.c.b16 %v390, %v388
    %v531 = vpack.c.b16 %v393, %v391
    %v532 = vpack.c.b16 %v394, %v392
    %v533 = vpack.c.b16 %v397, %v395
    %v534 = vpack.c.b16 %v398, %v396
    %v535 = vpack.c.b16 %v401, %v399
    %v536 = vpack.c.b16 %v402, %v400
    %v537 = vpack.c.b16 %v405, %v403
    %v538 = vpack.c.b16 %v406, %v404
    %v539 = vpack.c.b16 %v409, %v407
    %v540 = vpack.c.b16 %v410, %v408
    %v541 = vpack.c.b16 %v413, %v411
    %v542 = vpack.c.b16 %v414, %v412
    %v543 = vpack.c.b16 %v417, %v415
    %v544 = vpack.c.b16 %v418, %v416
    %v545 = vpack.c.b16 %v421, %v419
    %v546 = vpack.c.b16 %v422, %v420
    %v547 = vpack.c.b16 %v425, %v423
    %v548 = vpack.c.b16 %v426, %v424
    %v549 = vpack.c.b16 %v429, %v427
    %v550 = vpack.c.b16 %v430, %v428
    %v551 = vpack.c.b16 %v433, %v431
    %v552 = vpack.c.b16 %v434, %v432
    %v553 = vpack.c.b16 %v437, %v435
    %v554 = vpack.c.b16 %v438, %v436
    %v555 = vpack.c.b16 %v441, %v439
    %v556 = vpack.c.b16 %v442, %v440
    %v557 = vpack.c.b16 %v445, %v443
    %v558 = vpack.c.b16 %v446, %v444
    %v559 = vpack.c.b16 %v449, %v447
    %v560 = vpack.c.b16 %v450, %v448
    %v561 = vpack.c.b16 %v453, %v451
    %v562 = vpack.c.b16 %v454, %v452
    %v563 = vpack.c.b16 %v457, %v455
    %v564 = vpack.c.b16 %v458, %v456
    %v565 = vpack.c.b16 %v461, %v459
    %v566 = vpack.c.b16 %v462, %v460
    %v567 = vpack.c.b16 %v465, %v463
    %v568 = vpack.c.b16 %v466, %v464
    %v569 = vpack.c.b16 %v469, %v467
    %v570 = vpack.c.b16 %v470, %v468
    %v571 = vpack.c.b16 %v473, %v471
    %v572 = vpack.c.b16 %v474, %v472
    %vm671 = vcmask 130048
    %v673 = vsel %vm671, %v174, 0
    %675 = vmatprep.subr.bf16.mxu0 %v476
    %676 = vmatpush1.bf16.msra.mxu0 %v475
    %677 = vmatprep.subr.bf16.mxu0 %v478
    %678 = vmatpush1.bf16.msra.mxu0 %v477
    %679 = vmatprep.subr.bf16.mxu0 %v480
    %680 = vmatpush1.bf16.msra.mxu0 %v479
    %681 = vmatprep.subr.bf16.mxu0 %v482
    %682 = vmatpush1.bf16.msra.mxu0 %v481
    %683 = vmatprep.subr.bf16.mxu0 %v484
    %684 = vmatpush1.bf16.msra.mxu0 %v483
    %685 = vmatprep.subr.bf16.mxu0 %v486
    %686 = vmatpush1.bf16.msra.mxu0 %v485
    %687 = vmatprep.subr.bf16.mxu0 %v488
    %688 = vmatpush1.bf16.msra.mxu0 %v487
    %689 = vmatprep.subr.bf16.mxu0 %v490
    %690 = vmatpush1.bf16.msra.mxu0 %v489
    %691 = vmatprep.subr.bf16.mxu0 %v492
    %692 = vmatpush1.bf16.msra.mxu0 %v491
    %693 = vmatprep.subr.bf16.mxu0 %v494
    %694 = vmatpush1.bf16.msra.mxu0 %v493
    %695 = vmatprep.subr.bf16.mxu0 %v496
    %696 = vmatpush1.bf16.msra.mxu0 %v495
    %697 = vmatprep.subr.bf16.mxu0 %v498
    %698 = vmatpush1.bf16.msra.mxu0 %v497
    %699 = vmatprep.subr.bf16.mxu0 %v500
    %700 = vmatpush1.bf16.msra.mxu0 %v499
    %701 = vmatprep.subr.bf16.mxu0 %v502
    %702 = vmatpush1.bf16.msra.mxu0 %v501
    %703 = vmatprep.subr.bf16.mxu0 %v504
    %704 = vmatpush1.bf16.msra.mxu0 %v503
    %705 = vmatprep.subr.bf16.mxu0 %v506
    %706 = vmatpush1.bf16.msra.mxu0 %v505
    %707 = vmatprep.mubr.bf16.mxu0 %v169
    %708 = vmatmul.mubr.bf16.gmra.mrb[0].mxu0 %v168
    %v709 = vpop.f32.mrb[0].mxu0
    %v710 = vadd.f32 %v139, %v709
    %v711 = vpop.f32.mrb[0].mxu0
    %v712 = vadd.f32 %v143, %v711
    %v713 = vpop.f32.mrb[0].mxu0
    %v714 = vadd.f32 %v139, %v713
    %v715 = vpop.f32.mrb[0].mxu0
    %v716 = vadd.f32 %v143, %v715
    %717 = vdwg.mxu0
    %718 = vmatprep.subr.bf16.mxu0 %v508
    %719 = vmatpush1.bf16.msra.mxu0 %v507
    %720 = vmatprep.subr.bf16.mxu0 %v510
    %721 = vmatpush1.bf16.msra.mxu0 %v509
    %722 = vmatprep.subr.bf16.mxu0 %v512
    %723 = vmatpush1.bf16.msra.mxu0 %v511
    %724 = vmatprep.subr.bf16.mxu0 %v514
    %725 = vmatpush1.bf16.msra.mxu0 %v513
    %726 = vmatprep.subr.bf16.mxu0 %v516
    %727 = vmatpush1.bf16.msra.mxu0 %v515
    %728 = vmatprep.subr.bf16.mxu0 %v518
    %729 = vmatpush1.bf16.msra.mxu0 %v517
    %730 = vmatprep.subr.bf16.mxu0 %v520
    %731 = vmatpush1.bf16.msra.mxu0 %v519
    %732 = vmatprep.subr.bf16.mxu0 %v522
    %733 = vmatpush1.bf16.msra.mxu0 %v521
    %734 = vmatprep.subr.bf16.mxu0 %v524
    %735 = vmatpush1.bf16.msra.mxu0 %v523
    %736 = vmatprep.subr.bf16.mxu0 %v526
    %737 = vmatpush1.bf16.msra.mxu0 %v525
    %738 = vmatprep.subr.bf16.mxu0 %v528
    %739 = vmatpush1.bf16.msra.mxu0 %v527
    %740 = vmatprep.subr.bf16.mxu0 %v530
    %741 = vmatpush1.bf16.msra.mxu0 %v529
    %742 = vmatprep.subr.bf16.mxu0 %v532
    %743 = vmatpush1.bf16.msra.mxu0 %v531
    %744 = vmatprep.subr.bf16.mxu0 %v534
    %745 = vmatpush1.bf16.msra.mxu0 %v533
    %746 = vmatprep.subr.bf16.mxu0 %v536
    %747 = vmatpush1.bf16.msra.mxu0 %v535
    %748 = vmatprep.subr.bf16.mxu0 %v538
    %749 = vmatpush1.bf16.msra.mxu0 %v537
    %750 = vmatprep.mubr.bf16.mxu0 %v171
    %751 = vmatmul.mubr.bf16.gmra.mrb[0].mxu0 %v170
    %v752 = vpop.f32.mrb[0].mxu0
    %v753 = vadd.f32 %v710, %v752
    %v754 = vpop.f32.mrb[0].mxu0
    %v755 = vadd.f32 %v712, %v754
    %v756 = vpop.f32.mrb[0].mxu0
    %v757 = vadd.f32 %v714, %v756
    %v758 = vpop.f32.mrb[0].mxu0
    %v759 = vadd.f32 %v716, %v758
    %760 = vdwg.mxu0
    %761 = vmatprep.subr.bf16.mxu0 %v540
    %762 = vmatpush1.bf16.msra.mxu0 %v539
    %763 = vmatprep.subr.bf16.mxu0 %v542
    %764 = vmatpush1.bf16.msra.mxu0 %v541
    %765 = vmatprep.subr.bf16.mxu0 %v544
    %766 = vmatpush1.bf16.msra.mxu0 %v543
    %767 = vmatprep.subr.bf16.mxu0 %v546
    %768 = vmatpush1.bf16.msra.mxu0 %v545
    %769 = vmatprep.subr.bf16.mxu0 %v548
    %770 = vmatpush1.bf16.msra.mxu0 %v547
    %771 = vmatprep.subr.bf16.mxu0 %v550
    %772 = vmatpush1.bf16.msra.mxu0 %v549
    %773 = vmatprep.subr.bf16.mxu0 %v552
    %774 = vmatpush1.bf16.msra.mxu0 %v551
    %775 = vmatprep.subr.bf16.mxu0 %v554
    %776 = vmatpush1.bf16.msra.mxu0 %v553
    %777 = vmatprep.subr.bf16.mxu0 %v556
    %778 = vmatpush1.bf16.msra.mxu0 %v555
    %779 = vmatprep.subr.bf16.mxu0 %v558
    %780 = vmatpush1.bf16.msra.mxu0 %v557
    %781 = vmatprep.subr.bf16.mxu0 %v560
    %782 = vmatpush1.bf16.msra.mxu0 %v559
    %783 = vmatprep.subr.bf16.mxu0 %v562
    %784 = vmatpush1.bf16.msra.mxu0 %v561
    %785 = vmatprep.subr.bf16.mxu0 %v564
    %786 = vmatpush1.bf16.msra.mxu0 %v563
    %787 = vmatprep.subr.bf16.mxu0 %v566
    %788 = vmatpush1.bf16.msra.mxu0 %v565
    %789 = vmatprep.subr.bf16.mxu0 %v568
    %790 = vmatpush1.bf16.msra.mxu0 %v567
    %791 = vmatprep.subr.bf16.mxu0 %v570
    %792 = vmatpush1.bf16.msra.mxu0 %v569
    %793 = vmatprep.mubr.bf16.mxu0 %v173
    %794 = vmatmul.mubr.bf16.gmra.mrb[0].mxu0 %v172
    %v795 = vpop.f32.mrb[0].mxu0
    %v796 = vadd.f32 %v753, %v795
    %v797 = vpop.f32.mrb[0].mxu0
    %v798 = vadd.f32 %v755, %v797
    %v799 = vpop.f32.mrb[0].mxu0
    %v800 = vadd.f32 %v757, %v799
    %v801 = vpop.f32.mrb[0].mxu0
    %v802 = vadd.f32 %v759, %v801
    %803 = vdwg.mxu0
    %804 = vmatprep.subr.bf16.mxu0 %v572
    %805 = vmatpush1.bf16.msra.mxu0 %v571
    %806 = vmatprep.subr.bf16.mxu0 0
    %807 = vmatpush1.bf16.msra.mxu0 0
    %808 = vmatprep.subr.bf16.mxu0 0
    %809 = vmatpush1.bf16.msra.mxu0 0
    %810 = vmatprep.subr.bf16.mxu0 0
    %811 = vmatpush1.bf16.msra.mxu0 0
    %812 = vmatprep.subr.bf16.mxu0 0
    %813 = vmatpush1.bf16.msra.mxu0 0
    %814 = vmatprep.subr.bf16.mxu0 0
    %815 = vmatpush1.bf16.msra.mxu0 0
    %816 = vmatprep.subr.bf16.mxu0 0
    %817 = vmatpush1.bf16.msra.mxu0 0
    %818 = vmatprep.subr.bf16.mxu0 0
    %819 = vmatpush1.bf16.msra.mxu0 0
    %820 = vmatprep.subr.bf16.mxu0 0
    %821 = vmatpush1.bf16.msra.mxu0 0
    %822 = vmatprep.subr.bf16.mxu0 0
    %823 = vmatpush1.bf16.msra.mxu0 0
    %824 = vmatprep.subr.bf16.mxu0 0
    %825 = vmatpush1.bf16.msra.mxu0 0
    %826 = vmatprep.subr.bf16.mxu0 0
    %827 = vmatpush1.bf16.msra.mxu0 0
    %828 = vmatprep.subr.bf16.mxu0 0
    %829 = vmatpush1.bf16.msra.mxu0 0
    %830 = vmatprep.subr.bf16.mxu0 0
    %831 = vmatpush1.bf16.msra.mxu0 0
    %832 = vmatprep.subr.bf16.mxu0 0
    %833 = vmatpush1.bf16.msra.mxu0 0
    %834 = vmatprep.subr.bf16.mxu0 0
    %835 = vmatpush1.bf16.msra.mxu0 0
    %836 = vmatprep.mubr.bf16.mxu0 0
    %837 = vmatmul.mubr.bf16.gmra.mrb[0].mxu0 %v673
    %v838 = vpop.f32.mrb[0].mxu0
    %v839 = vadd.f32 %v796, %v838
    %v840 = vpop.f32.mrb[0].mxu0
    %v841 = vadd.f32 %v798, %v840
    %v842 = vpop.f32.mrb[0].mxu0
    %v843 = vadd.f32 %v800, %v842
    %v844 = vpop.f32.mrb[0].mxu0
    %v845 = vadd.f32 %v802, %v844
    %846 = vdwg.mxu0
    %v847 = vmax.f32 %v839, 0.0
    %v848 = vmax.f32 %v841, 0.0
    %v849 = vmax.f32 %v843, 0.0
    %v850 = vmax.f32 %v845, 0.0
    %v851 = vpack.c.bf16 %v849, %v847
    %v852 = vpack.c.bf16 %v850, %v848
    %v853 = vld [vmem:[%s3] sm:$0xff]
    %v854 = vld [vmem:[%s3 + $0x8] sm:$0xff]
    %v855 = vld [vmem:[%s3 + $0x10] sm:$0xff]
    %v856 = vld [vmem:[%s3 + $0x18] sm:$0xff]
    %v857 = vld [vmem:[%s3 + $0x20] sm:$0xff]
    %v858 = vld [vmem:[%s3 + $0x28] sm:$0xff]
    %v859 = vld [vmem:[%s3 + $0x30] sm:$0xff]
    %v860 = vld [vmem:[%s3 + $0x38] sm:$0xff]
    %v861 = vld [vmem:[%s3 + $0x40] sm:$0xff]
    %v862 = vld [vmem:[%s3 + $0x48] sm:$0xff]
    %v863 = vld [vmem:[%s3 + $0x50] sm:$0xff]
    %v864 = vld [vmem:[%s3 + $0x58] sm:$0xff]
    %v865 = vld [vmem:[%s3 + $0x60] sm:$0xff]
    %v866 = vld [vmem:[%s3 + $0x68] sm:$0xff]
    %v867 = vld [vmem:[%s3 + $0x70] sm:$0xff]
    %v868 = vld [vmem:[%s3 + $0x78] sm:$0xff]
    %v869 = vld [vmem:[%s3 + $0x80] sm:$0xff]
    %v870 = vld [vmem:[%s3 + $0x88] sm:$0xff]
    %v871 = vld [vmem:[%s3 + $0x90] sm:$0xff]
    %v872 = vld [vmem:[%s3 + $0x98] sm:$0xff]
    %v873 = vld [vmem:[%s3 + $0xa0] sm:$0xff]
    %v874 = vld [vmem:[%s3 + $0xa8] sm:$0xff]
    %v875 = vld [vmem:[%s3 + $0xb0] sm:$0xff]
    %v876 = vld [vmem:[%s3 + $0xb8] sm:$0xff]
    %v877 = vld [vmem:[%s3 + $0xc0] sm:$0xff]
    %v878 = vld [vmem:[%s3 + $0xc8] sm:$0xff]
    %v879 = vld [vmem:[%s3 + $0xd0] sm:$0xff]
    %v880 = vld [vmem:[%s3 + $0xd8] sm:$0xff]
    %v881 = vld [vmem:[%s3 + $0xe0] sm:$0xff]
    %v882 = vld [vmem:[%s3 + $0xe8] sm:$0xff]
    %v883 = vld [vmem:[%s3 + $0xf0] sm:$0xff]
    %v884 = vld [vmem:[%s3 + $0xf8] sm:$0xff]
    %v885 = vld [vmem:[%s4] sm:$0x3]
    %v887 = vlaneseq
    %v888 = vshrl.u32 %v887, 7
    %v889 = vsub.s32 0, %v888
    %v890 = vrot.slane %v885, %v889
    %v891 = vlaneseq
    %v892 = vshrl.u32 %v891, 7
    %v893 = vsub.s32 1, %v892
    %v894 = vrot.slane %v885, %v893
    %v929 = vunpack.c.l.b16 %v853
    %v930 = vunpack.c.h.b16 %v853
    %v931 = vunpack.c.l.b16 %v854
    %v932 = vunpack.c.h.b16 %v854
    %v933 = vunpack.c.l.b16 %v855
    %v934 = vunpack.c.h.b16 %v855
    %v935 = vunpack.c.l.b16 %v856
    %v936 = vunpack.c.h.b16 %v856
    %v937 = vunpack.c.l.b16 %v857
    %v938 = vunpack.c.h.b16 %v857
    %v939 = vunpack.c.l.b16 %v858
    %v940 = vunpack.c.h.b16 %v858
    %v941 = vunpack.c.l.b16 %v859
    %v942 = vunpack.c.h.b16 %v859
    %v943 = vunpack.c.l.b16 %v860
    %v944 = vunpack.c.h.b16 %v860
    %v945 = vunpack.c.l.b16 %v861
    %v946 = vunpack.c.h.b16 %v861
    %v947 = vunpack.c.l.b16 %v862
    %v948 = vunpack.c.h.b16 %v862
    %v949 = vunpack.c.l.b16 %v863
    %v950 = vunpack.c.h.b16 %v863
    %v951 = vunpack.c.l.b16 %v864
    %v952 = vunpack.c.h.b16 %v864
    %v953 = vunpack.c.l.b16 %v865
    %v954 = vunpack.c.h.b16 %v865
    %v955 = vunpack.c.l.b16 %v866
    %v956 = vunpack.c.h.b16 %v866
    %v957 = vunpack.c.l.b16 %v867
    %v958 = vunpack.c.h.b16 %v867
    %v959 = vunpack.c.l.b16 %v868
    %v960 = vunpack.c.h.b16 %v868
    %v961 = vunpack.c.l.b16 %v869
    %v962 = vunpack.c.h.b16 %v869
    %v963 = vunpack.c.l.b16 %v870
    %v964 = vunpack.c.h.b16 %v870
    %v965 = vunpack.c.l.b16 %v871
    %v966 = vunpack.c.h.b16 %v871
    %v967 = vunpack.c.l.b16 %v872
    %v968 = vunpack.c.h.b16 %v872
    %v969 = vunpack.c.l.b16 %v873
    %v970 = vunpack.c.h.b16 %v873
    %v971 = vunpack.c.l.b16 %v874
    %v972 = vunpack.c.h.b16 %v874
    %v973 = vunpack.c.l.b16 %v875
    %v974 = vunpack.c.h.b16 %v875
    %v975 = vunpack.c.l.b16 %v876
    %v976 = vunpack.c.h.b16 %v876
    %v977 = vunpack.c.l.b16 %v877
    %v978 = vunpack.c.h.b16 %v877
    %v979 = vunpack.c.l.b16 %v878
    %v980 = vunpack.c.h.b16 %v878
    %v981 = vunpack.c.l.b16 %v879
    %v982 = vunpack.c.h.b16 %v879
    %v983 = vunpack.c.l.b16 %v880
    %v984 = vunpack.c.h.b16 %v880
    %v985 = vunpack.c.l.b16 %v881
    %v986 = vunpack.c.h.b16 %v881
    %v987 = vunpack.c.l.b16 %v882
    %v988 = vunpack.c.h.b16 %v882
    %v989 = vunpack.c.l.b16 %v883
    %v990 = vunpack.c.h.b16 %v883
    %v991 = vunpack.c.l.b16 %v884
    %v992 = vunpack.c.h.b16 %v884
    %v993 = vpack.c.b16 %v931, %v929
    %v994 = vpack.c.b16 %v932, %v930
    %v995 = vpack.c.b16 %v935, %v933
    %v996 = vpack.c.b16 %v936, %v934
    %v997 = vpack.c.b16 %v939, %v937
    %v998 = vpack.c.b16 %v940, %v938
    %v999 = vpack.c.b16 %v943, %v941
    %v1000 = vpack.c.b16 %v944, %v942
    %v1001 = vpack.c.b16 %v947, %v945
    %v1002 = vpack.c.b16 %v948, %v946
    %v1003 = vpack.c.b16 %v951, %v949
    %v1004 = vpack.c.b16 %v952, %v950
    %v1005 = vpack.c.b16 %v955, %v953
    %v1006 = vpack.c.b16 %v956, %v954
    %v1007 = vpack.c.b16 %v959, %v957
    %v1008 = vpack.c.b16 %v960, %v958
    %v1009 = vpack.c.b16 %v963, %v961
    %v1010 = vpack.c.b16 %v964, %v962
    %v1011 = vpack.c.b16 %v967, %v965
    %v1012 = vpack.c.b16 %v968, %v966
    %v1013 = vpack.c.b16 %v971, %v969
    %v1014 = vpack.c.b16 %v972, %v970
    %v1015 = vpack.c.b16 %v975, %v973
    %v1016 = vpack.c.b16 %v976, %v974
    %v1017 = vpack.c.b16 %v979, %v977
    %v1018 = vpack.c.b16 %v980, %v978
    %v1019 = vpack.c.b16 %v983, %v981
    %v1020 = vpack.c.b16 %v984, %v982
    %v1021 = vpack.c.b16 %v987, %v985
    %v1022 = vpack.c.b16 %v988, %v986
    %v1023 = vpack.c.b16 %v991, %v989
    %v1024 = vpack.c.b16 %v992, %v990
    %1057 = vmatprep.subr.bf16.mxu0 %v994
    %1058 = vmatpush1.bf16.msra.mxu0 %v993
    %1059 = vmatprep.subr.bf16.mxu0 %v996
    %1060 = vmatpush1.bf16.msra.mxu0 %v995
    %1061 = vmatprep.subr.bf16.mxu0 %v998
    %1062 = vmatpush1.bf16.msra.mxu0 %v997
    %1063 = vmatprep.subr.bf16.mxu0 %v1000
    %1064 = vmatpush1.bf16.msra.mxu0 %v999
    %1065 = vmatprep.subr.bf16.mxu0 %v1002
    %1066 = vmatpush1.bf16.msra.mxu0 %v1001
    %1067 = vmatprep.subr.bf16.mxu0 %v1004
    %1068 = vmatpush1.bf16.msra.mxu0 %v1003
    %1069 = vmatprep.subr.bf16.mxu0 %v1006
    %1070 = vmatpush1.bf16.msra.mxu0 %v1005
    %1071 = vmatprep.subr.bf16.mxu0 %v1008
    %1072 = vmatpush1.bf16.msra.mxu0 %v1007
    %1073 = vmatprep.subr.bf16.mxu0 %v1010
    %1074 = vmatpush1.bf16.msra.mxu0 %v1009
    %1075 = vmatprep.subr.bf16.mxu0 %v1012
    %1076 = vmatpush1.bf16.msra.mxu0 %v1011
    %1077 = vmatprep.subr.bf16.mxu0 %v1014
    %1078 = vmatpush1.bf16.msra.mxu0 %v1013
    %1079 = vmatprep.subr.bf16.mxu0 %v1016
    %1080 = vmatpush1.bf16.msra.mxu0 %v1015
    %1081 = vmatprep.subr.bf16.mxu0 %v1018
    %1082 = vmatpush1.bf16.msra.mxu0 %v1017
    %1083 = vmatprep.subr.bf16.mxu0 %v1020
    %1084 = vmatpush1.bf16.msra.mxu0 %v1019
    %1085 = vmatprep.subr.bf16.mxu0 %v1022
    %1086 = vmatpush1.bf16.msra.mxu0 %v1021
    %1087 = vmatprep.subr.bf16.mxu0 %v1024
    %1088 = vmatpush1.bf16.msra.mxu0 %v1023
    %1089 = vmatprep.mubr.bf16.mxu0 %v852
    %1090 = vmatmul.mubr.bf16.gmra.mrb[0].mxu0 %v851
    %v1091 = vpop.f32.mrb[0].mxu0
    %v1092 = vadd.f32 %v890, %v1091
    %v1093 = vpop.f32.mrb[0].mxu0
    %v1094 = vadd.f32 %v894, %v1093
    %v1095 = vpop.f32.mrb[0].mxu0
    %v1096 = vadd.f32 %v890, %v1095
    %v1097 = vpop.f32.mrb[0].mxu0
    %v1098 = vadd.f32 %v894, %v1097
    %1099 = vdwg.mxu0
    %v1100 = vmax.f32 %v1092, 0.0
    %v1101 = vmax.f32 %v1094, 0.0
    %v1102 = vmax.f32 %v1096, 0.0
    %v1103 = vmax.f32 %v1098, 0.0
    %v1104 = vpack.c.bf16 %v1102, %v1100
    %v1105 = vpack.c.bf16 %v1103, %v1101
    %v1106 = vld [vmem:[%s5] sm:$0xf]
    %v1107 = vld [vmem:[%s5 + $0x4] sm:$0xf]
    %v1108 = vld [vmem:[%s5 + $0x8] sm:$0xf]
    %v1109 = vld [vmem:[%s5 + $0xc] sm:$0xf]
    %v1110 = vld [vmem:[%s5 + $0x10] sm:$0xf]
    %v1111 = vld [vmem:[%s5 + $0x14] sm:$0xf]
    %v1112 = vld [vmem:[%s5 + $0x18] sm:$0xf]
    %v1113 = vld [vmem:[%s5 + $0x1c] sm:$0xf]
    %v1114 = vld [vmem:[%s5 + $0x20] sm:$0xf]
    %v1115 = vld [vmem:[%s5 + $0x24] sm:$0xf]
    %v1116 = vld [vmem:[%s5 + $0x28] sm:$0xf]
    %v1117 = vld [vmem:[%s5 + $0x2c] sm:$0xf]
    %v1118 = vld [vmem:[%s5 + $0x30] sm:$0xf]
    %v1119 = vld [vmem:[%s5 + $0x34] sm:$0xf]
    %v1120 = vld [vmem:[%s5 + $0x38] sm:$0xf]
    %v1121 = vld [vmem:[%s5 + $0x3c] sm:$0xf]
    %v1122 = vld [vmem:[%s5 + $0x40] sm:$0xf]
    %v1123 = vld [vmem:[%s5 + $0x44] sm:$0xf]
    %v1124 = vld [vmem:[%s5 + $0x48] sm:$0xf]
    %v1125 = vld [vmem:[%s5 + $0x4c] sm:$0xf]
    %v1126 = vld [vmem:[%s5 + $0x50] sm:$0xf]
    %v1127 = vld [vmem:[%s5 + $0x54] sm:$0xf]
    %v1128 = vld [vmem:[%s5 + $0x58] sm:$0xf]
    %v1129 = vld [vmem:[%s5 + $0x5c] sm:$0xf]
    %v1130 = vld [vmem:[%s5 + $0x60] sm:$0xf]
    %v1131 = vld [vmem:[%s5 + $0x64] sm:$0xf]
    %v1132 = vld [vmem:[%s5 + $0x68] sm:$0xf]
    %v1133 = vld [vmem:[%s5 + $0x6c] sm:$0xf]
    %v1134 = vld [vmem:[%s5 + $0x70] sm:$0xf]
    %v1135 = vld [vmem:[%s5 + $0x74] sm:$0xf]
    %v1136 = vld [vmem:[%s5 + $0x78] sm:$0xf]
    %v1137 = vld [vmem:[%s5 + $0x7c] sm:$0xf]
    %v1138 = vld [vmem:[%s6] sm:$0x1]
    %v1140 = vlaneseq
    %v1141 = vshrl.u32 %v1140, 7
    %v1142 = vsub.s32 0, %v1141
    %v1143 = vrot.slane %v1138, %v1142
    %v1177 = vunpack.c.l.b16 %v1106
    %v1178 = vunpack.c.l.b16 %v1107
    %v1179 = vunpack.c.l.b16 %v1108
    %v1180 = vunpack.c.l.b16 %v1109
    %v1181 = vunpack.c.l.b16 %v1110
    %v1182 = vunpack.c.l.b16 %v1111
    %v1183 = vunpack.c.l.b16 %v1112
    %v1184 = vunpack.c.l.b16 %v1113
    %v1185 = vunpack.c.l.b16 %v1114
    %v1186 = vunpack.c.l.b16 %v1115
    %v1187 = vunpack.c.l.b16 %v1116
    %v1188 = vunpack.c.l.b16 %v1117
    %v1189 = vunpack.c.l.b16 %v1118
    %v1190 = vunpack.c.l.b16 %v1119
    %v1191 = vunpack.c.l.b16 %v1120
    %v1192 = vunpack.c.l.b16 %v1121
    %v1193 = vunpack.c.l.b16 %v1122
    %v1194 = vunpack.c.l.b16 %v1123
    %v1195 = vunpack.c.l.b16 %v1124
    %v1196 = vunpack.c.l.b16 %v1125
    %v1197 = vunpack.c.l.b16 %v1126
    %v1198 = vunpack.c.l.b16 %v1127
    %v1199 = vunpack.c.l.b16 %v1128
    %v1200 = vunpack.c.l.b16 %v1129
    %v1201 = vunpack.c.l.b16 %v1130
    %v1202 = vunpack.c.l.b16 %v1131
    %v1203 = vunpack.c.l.b16 %v1132
    %v1204 = vunpack.c.l.b16 %v1133
    %v1205 = vunpack.c.l.b16 %v1134
    %v1206 = vunpack.c.l.b16 %v1135
    %v1207 = vunpack.c.l.b16 %v1136
    %v1208 = vunpack.c.l.b16 %v1137
    %v1209 = vpack.c.b16 %v1178, %v1177
    %v1210 = vpack.c.b16 %v1180, %v1179
    %v1211 = vpack.c.b16 %v1182, %v1181
    %v1212 = vpack.c.b16 %v1184, %v1183
    %v1213 = vpack.c.b16 %v1186, %v1185
    %v1214 = vpack.c.b16 %v1188, %v1187
    %v1215 = vpack.c.b16 %v1190, %v1189
    %v1216 = vpack.c.b16 %v1192, %v1191
    %v1217 = vpack.c.b16 %v1194, %v1193
    %v1218 = vpack.c.b16 %v1196, %v1195
    %v1219 = vpack.c.b16 %v1198, %v1197
    %v1220 = vpack.c.b16 %v1200, %v1199
    %v1221 = vpack.c.b16 %v1202, %v1201
    %v1222 = vpack.c.b16 %v1204, %v1203
    %v1223 = vpack.c.b16 %v1206, %v1205
    %v1224 = vpack.c.b16 %v1208, %v1207
    %1241 = vmatprep.subr.bf16.mxu0 0
    %1242 = vmatpush1.bf16.msra.mxu0 %v1209
    %1243 = vmatprep.subr.bf16.mxu0 0
    %1244 = vmatpush1.bf16.msra.mxu0 %v1210
    %1245 = vmatprep.subr.bf16.mxu0 0
    %1246 = vmatpush1.bf16.msra.mxu0 %v1211
    %1247 = vmatprep.subr.bf16.mxu0 0
    %1248 = vmatpush1.bf16.msra.mxu0 %v1212
    %1249 = vmatprep.subr.bf16.mxu0 0
    %1250 = vmatpush1.bf16.msra.mxu0 %v1213
    %1251 = vmatprep.subr.bf16.mxu0 0
    %1252 = vmatpush1.bf16.msra.mxu0 %v1214
    %1253 = vmatprep.subr.bf16.mxu0 0
    %1254 = vmatpush1.bf16.msra.mxu0 %v1215
    %1255 = vmatprep.subr.bf16.mxu0 0
    %1256 = vmatpush1.bf16.msra.mxu0 %v1216
    %1257 = vmatprep.subr.bf16.mxu0 0
    %1258 = vmatpush1.bf16.msra.mxu0 %v1217
    %1259 = vmatprep.subr.bf16.mxu0 0
    %1260 = vmatpush1.bf16.msra.mxu0 %v1218
    %1261 = vmatprep.subr.bf16.mxu0 0
    %1262 = vmatpush1.bf16.msra.mxu0 %v1219
    %1263 = vmatprep.subr.bf16.mxu0 0
    %1264 = vmatpush1.bf16.msra.mxu0 %v1220
    %1265 = vmatprep.subr.bf16.mxu0 0
    %1266 = vmatpush1.bf16.msra.mxu0 %v1221
    %1267 = vmatprep.subr.bf16.mxu0 0
    %1268 = vmatpush1.bf16.msra.mxu0 %v1222
    %1269 = vmatprep.subr.bf16.mxu0 0
    %1270 = vmatpush1.bf16.msra.mxu0 %v1223
    %1271 = vmatprep.subr.bf16.mxu0 0
    %1272 = vmatpush1.bf16.msra.mxu0 %v1224
    %1273 = vmatprep.mubr.bf16.mxu0 %v1105
    %1274 = vmatmul.mubr.bf16.gmra.mrb[0].mxu0 %v1104
    %v1275 = vpop.f32.mrb[0].mxu0
    %v1276 = vadd.f32 %v1143, %v1275
    %v1277 = vpop.f32.mrb[0].mxu0
    %v1278 = vpop.f32.mrb[0].mxu0
    %v1279 = vadd.f32 %v1143, %v1278
    %v1280 = vpop.f32.mrb[0].mxu0
    %1281 = vdwg.mxu0
    %1282 = vmax.xlane.f32.xlu0 %v1276
    %v1283 = vpop.xlane.xlu0 %1282
    %1284 = vmax.xlane.f32.xlu0 %v1279
    %v1285 = vpop.xlane.xlu0 %1284
    %v1286 = vsub.f32 %v1276, %v1283
    %v1287 = vsub.f32 %v1279, %v1285
    %v1288 = vmul.f32 %v1286, 1.442695
    %v1289 = vpow.pop %v1288
    %v1290 = vmul.f32 %v1287, 1.442695
    %v1291 = vpow.pop %v1290
    %1292 = vadd.xlane.f32.xlu0 %v1289
    %v1293 = vpop.xlane.xlu0 %1292
    %1294 = vadd.xlane.f32.xlu0 %v1291
    %v1295 = vpop.xlane.xlu0 %1294
    %v1296 = vlog2.pop %v1293
    %v1297 = vmul.f32 %v1296, 0.6931472
    %v1298 = vlog2.pop %v1295
    %v1299 = vmul.f32 %v1298, 0.6931472
    %v1300 = vsub.f32 %v1286, %v1297
    %v1301 = vsub.f32 %v1287, %v1299
    %v1302 = vpack.c.bf16 %v1301, %v1300
    %v1304 = vunpack.c.l.b16 %v1302
    %v1305 = vunpack.c.h.b16 %v1302
    %v1306 = vpack.c.b16 %v1304, %v1304
    %v1307 = vpack.c.b16 %v1305, %v1305
    %1310 = vst [vmem:[#allocation2] sm:$0xf] %v1306
    %1311 = vst [vmem:[#allocation2 + $0x4] sm:$0xf] %v1307
    // Predicated region
    $region30: #{net200_forward.1} parent=1 // pred_check
      _
    $region31: #{net200_forward.1} parent=1 // pred_check_branch
      %1313 = sbr.rel (0) target = $region33
    $region32: #{net200_forward.1} parent=1 // pred_region
      %s1315 = ssub.s32 128, 128
      %1316 = vsyncadd [#allocation3], %s1315
      %s1317 = sshll.u32 [#allocation2], 4
      %s1318 = int_to_ptr.vmem [resolvable:$true] %s1317
      %1323 = dma.vmem_to_hbm [thread:$0]  %s1318, 128, %s7, [#allocation3], 64, 64, 4
    $region33: #{net200_forward.1} parent=1 // pred_fallthru
      _
    // Predicated region
    $region34: #{net200_forward.1} parent=1 // pred_check
      _
    $region35: #{net200_forward.1} parent=1 // pred_check_branch
      %1325 = sbr.rel (0) target = $region37
    $region36: #{net200_forward.1} parent=1 // pred_region
      %1326 = dma.done [#allocation3], 128
    $region37: #{net200_forward.1} parent=1 // pred_fallthru
      _
    %1327 = vsyncpa [#allocation3], 1

</llo_original>
